<compile_context>
chip_gen: v6e
topology: v6e:2x2x1
jax: 0.10.0
libtpu: 0.0.40
codegen_flags: <defaults>
</compile_context>

<pallas_src>
import functools

import numpy as np
import jax
import jax.numpy as jnp
from jax.experimental import pallas as pl
from jax.experimental.pallas import tpu as pltpu


def _round_up(v, m):
    return (v + m - 1) // m * m


# ---------------------------------------------------------------------------
# kernel: one (batch, channel-block) grid step
# ---------------------------------------------------------------------------
def _pucad_kernel(x_ref, s_ref, o_ref, *, out_h, out_w, tc, m, q, p, scale):
    """x_ref : (1, tc*out_h, f*W_in)        merged (channel,out_row) x (phase,width)
       s_ref : (f*W_in, m*p)                constant de-interleave + group-select matrix
       o_ref : (1, (tc//q)*m*out_h, out_w)  merged (out_channel,out_row) x out_width
    """
    # Single MXU pass: de-interleaves width, splits/sums height+width phases per
    # group l and applies the 1/group_size scale (when folded into s_ref).
    z = jnp.dot(x_ref[0], s_ref[...], preferred_element_type=jnp.float32)

    if q == 1 and m == 1:
        # group_size == factor**2: one contiguous slab store for the whole block.
        zz = z if scale is None else z * scale
        o_ref[0] = zz.astype(o_ref.dtype)
    elif q == 1:
        # each input channel yields m output channels (lane-aligned l groups of z)
        for c in range(tc):
            src = z[c * out_h:(c + 1) * out_h, :]
            for l in range(m):
                blk = src[:, l * p:l * p + out_w]
                if scale is not None:
                    blk = blk * scale
                o_ref[0, (c * m + l) * out_h:(c * m + l + 1) * out_h, :] = \
                    blk.astype(o_ref.dtype)
    else:
        # m == 1, q > 1: q input channels average into one output channel
        for oc in range(tc // q):
            acc = z[oc * q * out_h:(oc * q + 1) * out_h, :out_w]
            for r in range(1, q):
                acc = acc + z[(oc * q + r) * out_h:(oc * q + r + 1) * out_h, :out_w]
            if scale is not None:
                acc = acc * scale
            o_ref[0, oc * out_h:(oc + 1) * out_h, :] = acc.astype(o_ref.dtype)


# ---------------------------------------------------------------------------
# host-side constants / tiling choices
# ---------------------------------------------------------------------------
def _sel_matrix(f, w_in, out_w, m, gs, p, value, dtype):
    """s[i*w_in + ow*f + j, l*p + ow] = value  with  l = (i*f + j) // gs."""
    s = np.zeros((f * w_in, m * p), dtype=np.float32)
    ow = np.arange(out_w)
    for i in range(f):
        for j in range(f):
            l = (i * f + j) // gs
            s[i * w_in + ow * f + j, l * p + ow] = value
    return jnp.asarray(s, dtype=dtype)


def _pick_channel_block(batch, c_in, q, m, f, out_h, out_w, w_in, itemsize,
                        ncols, budget_bytes):
    sub = max(8, 32 // itemsize)          # sublane tile: 8 f32 / 16 bf16 / 32 int8

    def footprint(tc):
        in_rows = _round_up(tc * out_h, sub)
        in_cols = _round_up(f * w_in, 128)
        out_rows = _round_up((tc // q) * m * out_h, sub)
        out_cols = _round_up(out_w, 128)
        s_rows = _round_up(f * w_in, sub)
        s_cols = _round_up(ncols, 128)
        z_rows = _round_up(tc * out_h, 8)
        return (2 * in_rows * in_cols * itemsize        # double-buffered input
                + 2 * out_rows * out_cols * itemsize    # double-buffered output
                + 2 * s_rows * s_cols * itemsize        # selection matrix buffers
                + z_rows * s_cols * 4                   # f32 matmul result
                + in_rows * in_cols * itemsize)         # loaded input value / spill

    valid = []
    for tc in range(q, c_in + 1, q):
        if c_in % tc:
            continue
        if tc != c_in and ((tc * out_h) % sub or ((tc // q) * m * out_h) % sub):
            continue
        valid.append(tc)

    fitting = [t for t in valid if footprint(t) <= budget_bytes]
    cand = fitting if fitting else [min(valid)]
    capped = [t for t in cand if (t // q) * m <= 128]   # keep the store loop small
    if capped:
        cand = capped
    for tier in ([t for t in cand if batch * (c_in // t) >= 4],   # 2 TCs + overlap
                 [t for t in cand if batch * (c_in // t) >= 2],
                 cand):
        if tier:
            tc = max(tier)
            break
    return tc, footprint(tc)


# ---------------------------------------------------------------------------
# public wrapper (same semantics as the PyTorch module's forward)
# ---------------------------------------------------------------------------
def pixel_unshuffle_channel_avg_downsample(x, out_channels, factor,
                                           vmem_block_budget=16 * 1024 * 1024):
    b, c_in, h_in, w_in = x.shape
    f = int(factor)
    assert h_in % f == 0 and w_in % f == 0, "spatial dims must be divisible by factor"
    assert (c_in * f * f) % out_channels == 0
    out_h, out_w = h_in // f, w_in // f
    gs = c_in * f * f // out_channels          # group_size
    f2 = f * f

    if f2 % gs == 0:
        m, q = f2 // gs, 1        # each input channel yields m output channels
    elif gs % f2 == 0:
        m, q = 1, gs // f2        # q input channels average into one output channel
    else:
        # TODO(synk): averaging groups that straddle input-channel boundaries
        # (group_size neither divides nor is a multiple of factor**2) are not
        # supported; EfficientViT never instantiates such configs.
        raise NotImplementedError("unsupported (in_channels, out_channels, factor)")

    # pad each l column group to a 128-lane boundary so z slices are lane-aligned
    p = _round_up(out_w, 128) if m > 1 else out_w
    ncols = m * p
    itemsize = x.dtype.itemsize

    tc, footprint = _pick_channel_block(b, c_in, q, m, f, out_h, out_w, w_in,
                                        itemsize, ncols, vmem_block_budget)

    # fold 1/gs into the selection matrix when it stays exact in x.dtype
    fold = (x.dtype == jnp.float32) or ((gs & (gs - 1)) == 0)
    sel = _sel_matrix(f, w_in, out_w, m, gs, p,
                      (1.0 / gs) if fold else 1.0, x.dtype)
    scale = None if fold else 1.0 / gs

    # layout-compatible (free) views: merge (channel,out_row) and (phase,width)
    x_view = x.reshape(b, c_in * out_h, f * w_in)
    out_rows_blk = (tc // q) * m * out_h

    kernel = functools.partial(_pucad_kernel, out_h=out_h, out_w=out_w,
                               tc=tc, m=m, q=q, p=p, scale=scale)

    vmem_limit = min(max(int(footprint * 1.5) + (2 << 20), 24 << 20), 48 << 20)

    out = pl.pallas_call(
        kernel,
        out_shape=jax.ShapeDtypeStruct((b, out_channels * out_h, out_w), x.dtype),
        grid=(b, c_in // tc),
        in_specs=[
            pl.BlockSpec((1, tc * out_h, f * w_in), lambda bi, cb: (bi, cb, 0)),
            pl.BlockSpec((f * w_in, ncols), lambda bi, cb: (0, 0)),
        ],
        out_specs=pl.BlockSpec((1, out_rows_blk, out_w), lambda bi, cb: (bi, cb, 0)),
        compiler_params=pltpu.CompilerParams(
            dimension_semantics=("parallel", "parallel"),
            vmem_limit_bytes=vmem_limit),
    )(x_view, sel)

    return out.reshape(b, out_channels, out_h, out_w)


# ---------------------------------------------------------------------------
# pure-JAX reference (mirrors the PyTorch forward) + self-test
# ---------------------------------------------------------------------------
def _reference(x, out_channels, factor):
    b, c, h, w = x.shape
    f = factor
    y = x.reshape(b, c, h // f, f, w // f, f)
    y = y.transpose(0, 1, 3, 5, 2, 4).reshape(b, c * f * f, h // f, w // f)
    gs = c * f * f // out_channels
    return y.reshape(b, out_channels, gs, h // f, w // f).mean(axis=2)


if __name__ == "__main__":
    key = jax.random.PRNGKey(0)
    configs = [
        # (B, Cin, Cout, factor, Hin, Win, dtype)
        (2, 16, 32, 2, 16, 16, jnp.float32),   # gs=2: m=2 output channels / input channel
        (2, 16,  8, 2, 16, 16, jnp.float32),   # gs=8: q=2 input channels per output
        (2,  8,  8, 2, 16, 16, jnp.float32),   # gs=4 == factor**2: single-slab store path
        (1, 32, 64, 2, 14, 14, jnp.float32),   # non-128-aligned out_w, non-8 out_h
        (2, 16, 32, 2, 16, 16, jnp.bfloat16),  # low-precision (16-row sublane tile) path
    ]
    for b, cin, cout, f, hin, win, dt in configs:
        key, sub = jax.random.split(key)
        x = jax.random.normal(sub, (b, cin, hin, win), jnp.float32).astype(dt)
        out = jax.block_until_ready(
            pixel_unshuffle_channel_avg_downsample(x, cout, f))
        ref = _reference(x.astype(jnp.float32), cout, f)
        assert out.shape == (b, cout, hin // f, win // f) and out.dtype == x.dtype
        tol = 1e-5 if dt == jnp.float32 else 3e-2
        ok = bool(jnp.allclose(out.astype(jnp.float32), ref, atol=tol, rtol=tol))
        assert ok, f"mismatch vs reference for config {(b, cin, cout, f, hin, win, dt)}"
    print("KERNEL_OK")
</pallas_src>

<mosaic_0001>
module attributes {stable_mosaic.version = 11 : i64} {
  func.func @_pucad_kernel(%arg0: i32, %arg1: i32, %arg2: memref<1x64x32xf32, #tpu.memory_space<vmem>>, %arg3: memref<32x256xf32, #tpu.memory_space<vmem>>, %arg4: memref<1x128x8xf32, #tpu.memory_space<vmem>>) attributes {dimension_semantics = [#tpu.dimension_semantics<parallel>, #tpu.dimension_semantics<parallel>], iteration_bounds = array<i64: 2, 2>, scalar_prefetch = 0 : i64, scratch_operands = 0 : i64, tpu.core_type = #tpu.core_type<tc>, window_params = [{transform_indices = @transform_0, window_bounds = array<i64: 1, 64, 32>}, {pipeline_mode = #tpu.pipeline_mode<synchronous>, transform_indices = @transform_1, window_bounds = array<i64: 32, 256>}, {transform_indices = @transform_2, window_bounds = array<i64: 1, 128, 8>}]} {
    %c0 = arith.constant 0 : index
    %c0_0 = arith.constant 0 : index
    %c0_1 = arith.constant 0 : index
    %0 = vector.load %arg2[%c0, %c0_0, %c0_1] : memref<1x64x32xf32, #tpu.memory_space<vmem>>, vector<1x64x32xf32>
    %1 = vector.shape_cast %0 : vector<1x64x32xf32> to vector<64x32xf32>
    %c0_2 = arith.constant 0 : index
    %c0_3 = arith.constant 0 : index
    %2 = vector.load %arg3[%c0_2, %c0_3] : memref<32x256xf32, #tpu.memory_space<vmem>>, vector<32x256xf32>
    %cst = arith.constant dense<0.000000e+00> : vector<64x256xf32>
    %3 = tpu.matmul %1, %2, %cst {dimension_numbers = #tpu.dot_dimension_numbers<[1], [0], [0], [1], [0, 0, 1, 1], [], []>} : vector<64x32xf32>, vector<32x256xf32>, vector<64x256xf32> -> vector<64x256xf32>
    %4 = vector.extract_strided_slice %3 {offsets = [0, 0], sizes = [8, 256], strides = [1, 1]} : vector<64x256xf32> to vector<8x256xf32>
    %5 = vector.extract_strided_slice %4 {offsets = [0, 0], sizes = [8, 8], strides = [1, 1]} : vector<8x256xf32> to vector<8x8xf32>
    %c0_4 = arith.constant 0 : index
    %c0_5 = arith.constant 0 : index
    %c0_6 = arith.constant 0 : index
    %6 = vector.load %arg4[%c0_4, %c0_5, %c0_6] : memref<1x128x8xf32, #tpu.memory_space<vmem>>, vector<1x8x8xf32>
    %7 = vector.shape_cast %6 : vector<1x8x8xf32> to vector<8x8xf32>
    %8 = vector.shape_cast %5 : vector<8x8xf32> to vector<1x8x8xf32>
    tpu.vector_store %arg4[%c0_4, %c0_5, %c0_6], %8 {strides = array<i32>} : memref<1x128x8xf32, #tpu.memory_space<vmem>>, vector<1x8x8xf32>,
    %9 = vector.extract_strided_slice %4 {offsets = [0, 128], sizes = [8, 8], strides = [1, 1]} : vector<8x256xf32> to vector<8x8xf32>
    %c0_7 = arith.constant 0 : index
    %c8 = arith.constant 8 : index
    %c0_8 = arith.constant 0 : index
    %10 = vector.load %arg4[%c0_7, %c8, %c0_8] : memref<1x128x8xf32, #tpu.memory_space<vmem>>, vector<1x8x8xf32>
    %11 = vector.shape_cast %10 : vector<1x8x8xf32> to vector<8x8xf32>
    %12 = vector.shape_cast %9 : vector<8x8xf32> to vector<1x8x8xf32>
    tpu.vector_store %arg4[%c0_7, %c8, %c0_8], %12 {strides = array<i32>} : memref<1x128x8xf32, #tpu.memory_space<vmem>>, vector<1x8x8xf32>,
    %13 = vector.extract_strided_slice %3 {offsets = [8, 0], sizes = [8, 256], strides = [1, 1]} : vector<64x256xf32> to vector<8x256xf32>
    %14 = vector.extract_strided_slice %13 {offsets = [0, 0], sizes = [8, 8], strides = [1, 1]} : vector<8x256xf32> to vector<8x8xf32>
    %c0_9 = arith.constant 0 : index
    %c16 = arith.constant 16 : index
    %c0_10 = arith.constant 0 : index
    %15 = vector.load %arg4[%c0_9, %c16, %c0_10] : memref<1x128x8xf32, #tpu.memory_space<vmem>>, vector<1x8x8xf32>
    %16 = vector.shape_cast %15 : vector<1x8x8xf32> to vector<8x8xf32>
    %17 = vector.shape_cast %14 : vector<8x8xf32> to vector<1x8x8xf32>
    tpu.vector_store %arg4[%c0_9, %c16, %c0_10], %17 {strides = array<i32>} : memref<1x128x8xf32, #tpu.memory_space<vmem>>, vector<1x8x8xf32>,
    %18 = vector.extract_strided_slice %13 {offsets = [0, 128], sizes = [8, 8], strides = [1, 1]} : vector<8x256xf32> to vector<8x8xf32>
    %c0_11 = arith.constant 0 : index
    %c24 = arith.constant 24 : index
    %c0_12 = arith.constant 0 : index
    %19 = vector.load %arg4[%c0_11, %c24, %c0_12] : memref<1x128x8xf32, #tpu.memory_space<vmem>>, vector<1x8x8xf32>
    %20 = vector.shape_cast %19 : vector<1x8x8xf32> to vector<8x8xf32>
    %21 = vector.shape_cast %18 : vector<8x8xf32> to vector<1x8x8xf32>
    tpu.vector_store %arg4[%c0_11, %c24, %c0_12], %21 {strides = array<i32>} : memref<1x128x8xf32, #tpu.memory_space<vmem>>, vector<1x8x8xf32>,
    %22 = vector.extract_strided_slice %3 {offsets = [16, 0], sizes = [8, 256], strides = [1, 1]} : vector<64x256xf32> to vector<8x256xf32>
    %23 = vector.extract_strided_slice %22 {offsets = [0, 0], sizes = [8, 8], strides = [1, 1]} : vector<8x256xf32> to vector<8x8xf32>
    %c0_13 = arith.constant 0 : index
    %c32 = arith.constant 32 : index
    %c0_14 = arith.constant 0 : index
    %24 = vector.load %arg4[%c0_13, %c32, %c0_14] : memref<1x128x8xf32, #tpu.memory_space<vmem>>, vector<1x8x8xf32>
    %25 = vector.shape_cast %24 : vector<1x8x8xf32> to vector<8x8xf32>
    %26 = vector.shape_cast %23 : vector<8x8xf32> to vector<1x8x8xf32>
    tpu.vector_store %arg4[%c0_13, %c32, %c0_14], %26 {strides = array<i32>} : memref<1x128x8xf32, #tpu.memory_space<vmem>>, vector<1x8x8xf32>,
    %27 = vector.extract_strided_slice %22 {offsets = [0, 128], sizes = [8, 8], strides = [1, 1]} : vector<8x256xf32> to vector<8x8xf32>
    %c0_15 = arith.constant 0 : index
    %c40 = arith.constant 40 : index
    %c0_16 = arith.constant 0 : index
    %28 = vector.load %arg4[%c0_15, %c40, %c0_16] : memref<1x128x8xf32, #tpu.memory_space<vmem>>, vector<1x8x8xf32>
    %29 = vector.shape_cast %28 : vector<1x8x8xf32> to vector<8x8xf32>
    %30 = vector.shape_cast %27 : vector<8x8xf32> to vector<1x8x8xf32>
    tpu.vector_store %arg4[%c0_15, %c40, %c0_16], %30 {strides = array<i32>} : memref<1x128x8xf32, #tpu.memory_space<vmem>>, vector<1x8x8xf32>,
    %31 = vector.extract_strided_slice %3 {offsets = [24, 0], sizes = [8, 256], strides = [1, 1]} : vector<64x256xf32> to vector<8x256xf32>
    %32 = vector.extract_strided_slice %31 {offsets = [0, 0], sizes = [8, 8], strides = [1, 1]} : vector<8x256xf32> to vector<8x8xf32>
    %c0_17 = arith.constant 0 : index
    %c48 = arith.constant 48 : index
    %c0_18 = arith.constant 0 : index
    %33 = vector.load %arg4[%c0_17, %c48, %c0_18] : memref<1x128x8xf32, #tpu.memory_space<vmem>>, vector<1x8x8xf32>
    %34 = vector.shape_cast %33 : vector<1x8x8xf32> to vector<8x8xf32>
    %35 = vector.shape_cast %32 : vector<8x8xf32> to vector<1x8x8xf32>
    tpu.vector_store %arg4[%c0_17, %c48, %c0_18], %35 {strides = array<i32>} : memref<1x128x8xf32, #tpu.memory_space<vmem>>, vector<1x8x8xf32>,
    %36 = vector.extract_strided_slice %31 {offsets = [0, 128], sizes = [8, 8], strides = [1, 1]} : vector<8x256xf32> to vector<8x8xf32>
    %c0_19 = arith.constant 0 : index
    %c56 = arith.constant 56 : index
    %c0_20 = arith.constant 0 : index
    %37 = vector.load %arg4[%c0_19, %c56, %c0_20] : memref<1x128x8xf32, #tpu.memory_space<vmem>>, vector<1x8x8xf32>
    %38 = vector.shape_cast %37 : vector<1x8x8xf32> to vector<8x8xf32>
    %39 = vector.shape_cast %36 : vector<8x8xf32> to vector<1x8x8xf32>
    tpu.vector_store %arg4[%c0_19, %c56, %c0_20], %39 {strides = array<i32>} : memref<1x128x8xf32, #tpu.memory_space<vmem>>, vector<1x8x8xf32>,
    %40 = vector.extract_strided_slice %3 {offsets = [32, 0], sizes = [8, 256], strides = [1, 1]} : vector<64x256xf32> to vector<8x256xf32>
    %41 = vector.extract_strided_slice %40 {offsets = [0, 0], sizes = [8, 8], strides = [1, 1]} : vector<8x256xf32> to vector<8x8xf32>
    %c0_21 = arith.constant 0 : index
    %c64 = arith.constant 64 : index
    %c0_22 = arith.constant 0 : index
    %42 = vector.load %arg4[%c0_21, %c64, %c0_22] : memref<1x128x8xf32, #tpu.memory_space<vmem>>, vector<1x8x8xf32>
    %43 = vector.shape_cast %42 : vector<1x8x8xf32> to vector<8x8xf32>
    %44 = vector.shape_cast %41 : vector<8x8xf32> to vector<1x8x8xf32>
    tpu.vector_store %arg4[%c0_21, %c64, %c0_22], %44 {strides = array<i32>} : memref<1x128x8xf32, #tpu.memory_space<vmem>>, vector<1x8x8xf32>,
    %45 = vector.extract_strided_slice %40 {offsets = [0, 128], sizes = [8, 8], strides = [1, 1]} : vector<8x256xf32> to vector<8x8xf32>
    %c0_23 = arith.constant 0 : index
    %c72 = arith.constant 72 : index
    %c0_24 = arith.constant 0 : index
    %46 = vector.load %arg4[%c0_23, %c72, %c0_24] : memref<1x128x8xf32, #tpu.memory_space<vmem>>, vector<1x8x8xf32>
    %47 = vector.shape_cast %46 : vector<1x8x8xf32> to vector<8x8xf32>
    %48 = vector.shape_cast %45 : vector<8x8xf32> to vector<1x8x8xf32>
    tpu.vector_store %arg4[%c0_23, %c72, %c0_24], %48 {strides = array<i32>} : memref<1x128x8xf32, #tpu.memory_space<vmem>>, vector<1x8x8xf32>,
    %49 = vector.extract_strided_slice %3 {offsets = [40, 0], sizes = [8, 256], strides = [1, 1]} : vector<64x256xf32> to vector<8x256xf32>
    %50 = vector.extract_strided_slice %49 {offsets = [0, 0], sizes = [8, 8], strides = [1, 1]} : vector<8x256xf32> to vector<8x8xf32>
    %c0_25 = arith.constant 0 : index
    %c80 = arith.constant 80 : index
    %c0_26 = arith.constant 0 : index
    %51 = vector.load %arg4[%c0_25, %c80, %c0_26] : memref<1x128x8xf32, #tpu.memory_space<vmem>>, vector<1x8x8xf32>
    %52 = vector.shape_cast %51 : vector<1x8x8xf32> to vector<8x8xf32>
    %53 = vector.shape_cast %50 : vector<8x8xf32> to vector<1x8x8xf32>
    tpu.vector_store %arg4[%c0_25, %c80, %c0_26], %53 {strides = array<i32>} : memref<1x128x8xf32, #tpu.memory_space<vmem>>, vector<1x8x8xf32>,
    %54 = vector.extract_strided_slice %49 {offsets = [0, 128], sizes = [8, 8], strides = [1, 1]} : vector<8x256xf32> to vector<8x8xf32>
    %c0_27 = arith.constant 0 : index
    %c88 = arith.constant 88 : index
    %c0_28 = arith.constant 0 : index
    %55 = vector.load %arg4[%c0_27, %c88, %c0_28] : memref<1x128x8xf32, #tpu.memory_space<vmem>>, vector<1x8x8xf32>
    %56 = vector.shape_cast %55 : vector<1x8x8xf32> to vector<8x8xf32>
    %57 = vector.shape_cast %54 : vector<8x8xf32> to vector<1x8x8xf32>
    tpu.vector_store %arg4[%c0_27, %c88, %c0_28], %57 {strides = array<i32>} : memref<1x128x8xf32, #tpu.memory_space<vmem>>, vector<1x8x8xf32>,
    %58 = vector.extract_strided_slice %3 {offsets = [48, 0], sizes = [8, 256], strides = [1, 1]} : vector<64x256xf32> to vector<8x256xf32>
    %59 = vector.extract_strided_slice %58 {offsets = [0, 0], sizes = [8, 8], strides = [1, 1]} : vector<8x256xf32> to vector<8x8xf32>
    %c0_29 = arith.constant 0 : index
    %c96 = arith.constant 96 : index
    %c0_30 = arith.constant 0 : index
    %60 = vector.load %arg4[%c0_29, %c96, %c0_30] : memref<1x128x8xf32, #tpu.memory_space<vmem>>, vector<1x8x8xf32>
    %61 = vector.shape_cast %60 : vector<1x8x8xf32> to vector<8x8xf32>
    %62 = vector.shape_cast %59 : vector<8x8xf32> to vector<1x8x8xf32>
    tpu.vector_store %arg4[%c0_29, %c96, %c0_30], %62 {strides = array<i32>} : memref<1x128x8xf32, #tpu.memory_space<vmem>>, vector<1x8x8xf32>,
    %63 = vector.extract_strided_slice %58 {offsets = [0, 128], sizes = [8, 8], strides = [1, 1]} : vector<8x256xf32> to vector<8x8xf32>
    %c0_31 = arith.constant 0 : index
    %c104 = arith.constant 104 : index
    %c0_32 = arith.constant 0 : index
    %64 = vector.load %arg4[%c0_31, %c104, %c0_32] : memref<1x128x8xf32, #tpu.memory_space<vmem>>, vector<1x8x8xf32>
    %65 = vector.shape_cast %64 : vector<1x8x8xf32> to vector<8x8xf32>
    %66 = vector.shape_cast %63 : vector<8x8xf32> to vector<1x8x8xf32>
    tpu.vector_store %arg4[%c0_31, %c104, %c0_32], %66 {strides = array<i32>} : memref<1x128x8xf32, #tpu.memory_space<vmem>>, vector<1x8x8xf32>,
    %67 = vector.extract_strided_slice %3 {offsets = [56, 0], sizes = [8, 256], strides = [1, 1]} : vector<64x256xf32> to vector<8x256xf32>
    %68 = vector.extract_strided_slice %67 {offsets = [0, 0], sizes = [8, 8], strides = [1, 1]} : vector<8x256xf32> to vector<8x8xf32>
    %c0_33 = arith.constant 0 : index
    %c112 = arith.constant 112 : index
    %c0_34 = arith.constant 0 : index
    %69 = vector.load %arg4[%c0_33, %c112, %c0_34] : memref<1x128x8xf32, #tpu.memory_space<vmem>>, vector<1x8x8xf32>
    %70 = vector.shape_cast %69 : vector<1x8x8xf32> to vector<8x8xf32>
    %71 = vector.shape_cast %68 : vector<8x8xf32> to vector<1x8x8xf32>
    tpu.vector_store %arg4[%c0_33, %c112, %c0_34], %71 {strides = array<i32>} : memref<1x128x8xf32, #tpu.memory_space<vmem>>, vector<1x8x8xf32>,
    %72 = vector.extract_strided_slice %67 {offsets = [0, 128], sizes = [8, 8], strides = [1, 1]} : vector<8x256xf32> to vector<8x8xf32>
    %c0_35 = arith.constant 0 : index
    %c120 = arith.constant 120 : index
    %c0_36 = arith.constant 0 : index
    %73 = vector.load %arg4[%c0_35, %c120, %c0_36] : memref<1x128x8xf32, #tpu.memory_space<vmem>>, vector<1x8x8xf32>
    %74 = vector.shape_cast %73 : vector<1x8x8xf32> to vector<8x8xf32>
    %75 = vector.shape_cast %72 : vector<8x8xf32> to vector<1x8x8xf32>
    tpu.vector_store %arg4[%c0_35, %c120, %c0_36], %75 {strides = array<i32>} : memref<1x128x8xf32, #tpu.memory_space<vmem>>, vector<1x8x8xf32>,
    return
  }
  func.func @transform_0(%arg0: i32, %arg1: i32) -> (i32, i32, i32) {
    %c0_i32 = arith.constant 0 : i32
    %c0_i32_0 = arith.constant 0 : i32
    return %arg0, %arg1, %c0_i32 : i32, i32, i32
  }
  func.func @transform_1(%arg0: i32, %arg1: i32) -> (i32, i32) {
    %c0_i32 = arith.constant 0 : i32
    %c0_i32_0 = arith.constant 0 : i32
    %c0_i32_1 = arith.constant 0 : i32
    return %c0_i32, %c0_i32_0 : i32, i32
  }
  func.func @transform_2(%arg0: i32, %arg1: i32) -> (i32, i32, i32) {
    %c0_i32 = arith.constant 0 : i32
    %c0_i32_0 = arith.constant 0 : i32
    return %arg0, %arg1, %c0_i32 : i32, i32, i32
  }
}

</mosaic_0001>

<llo_original>
// kernel: tpu_custom_call.1
$region0: #{tpu_custom_call.1}
  #allocation0 [shape = 'u32[]', space=smem, size = 0x4, offset = 0x4, fixed_abs, tag = 'smem constant byte address 0x4 - core index']
  #allocation1 [shape = 'u32[144,128]{1,0:T(1,128)}', space=vmem, size = 0x12000, scoped, tag = 'internal scratch']
  %s0 = inlined_call_operand.vmem [shape: f32[2,128,32], index: 0, kind: input, shape index: {}]
  %s1 = inlined_call_operand.vmem [shape: f32[32,256], index: 1, kind: input, shape index: {}]
  %s2 = inlined_call_operand.vmem [shape: f32[2,256,8], index: 2, kind: output, shape index: {}]
  %s3 = sld [smem:[#allocation0]]
  $region41: #{tpu_custom_call.1} parent=0
    _
  %s5 = ssub.s32 1, %s3
  %s6 = scalar_select 0, %s5, %s3
  loop: start=0, step=1, limit=6
  $region2: #{tpu_custom_call.1} parent=0 // loop_pre_header
    _
  $region3: #{tpu_custom_call.1} parent=0 // loop_header
    %s8 = sphi 0, %s12
    %p9 = scmp.ge.s32.totalorder %s8, 6
    %s15 = sphi 0, %s27
    %s16 = sphi 0, %s23
    %s17 = sphi 0, %s15
    %s18 = sphi 0, %s16
    %s19 = sphi 0, %s17
    %s20 = sphi 0, %s18
    %s32 = sphi 0, %s34
    %s35 = sphi 0, %s32
    %s36 = sphi 0, %s35
    %s52 = sphi 0, %s36
    %s56 = sphi 0, %s56
    %s58 = sphi 0, %s56
    %s59 = sphi 0, %s58
    %s73 = sphi 0, %s59
    %s81 = sphi 0, %s83
    %s84 = sphi 0, %s81
    %s85 = sphi 0, %s84
    %s101 = sphi 0, %s85
  $region4: #{tpu_custom_call.1} parent=0 // loop_header_branch
    %11 = sbr.rel (%p9) target = $region8
  $region5: #{tpu_custom_call.1} parent=0 // loop_body
    %s13 = ssub.s32 %s8, 1
    %s14 = ssub.s32 %s8, 2
    %s21 = sadd.s32 1, %s16
    %p22 = scmp.ge.s32.totalorder %s21, 2
    %s23 = scalar_select %p22, 0, %s21
    %s24 = sadd.s32 1, %s15
    %s25 = scalar_select %p22, %s24, %s15
    %p26 = scmp.ge.s32.totalorder %s25, 2
    %s27 = scalar_select %p26, 0, %s25
    %s28 = ssub.s32 %s15, %s27
    %s29 = ssub.s32 %s16, %s23
    %s30 = sor.u32 %s28, %s29
    %p31 = scmp.eq.s32.totalorder %s30, 0
    %s33 = sadd.s32 %s32, 1
    %s34 = scalar_select %p31, %s32, %s33
    %p37 = pneg %p31
    %p38 = scmp.eq.s32.totalorder %s8, 3
    %p39 = por %p37, %p38
    %p40 = scmp.ne.s32.totalorder %s32, %s35
    %p41 = scmp.eq.s32.totalorder %s8, 0
    %p42 = por %p40, %p41
    %p43 = scmp.ne.s32.totalorder %s32, %s35
    %p44 = scmp.eq.s32.totalorder %s13, 3
    %p45 = por %p43, %p44
    %p46 = scmp.ne.s32.totalorder %s35, %s36
    %p47 = scmp.eq.s32.totalorder %s13, 0
    %p48 = por %p46, %p47
    %p49 = scmp.ne.s32.totalorder %s35, %s36
    %p50 = scmp.eq.s32.totalorder %s14, 3
    %p51 = por %p49, %p50
    %p53 = scmp.ne.s32.totalorder %s36, %s52
    %p54 = scmp.eq.s32.totalorder %s14, 0
    %p55 = por %p53, %p54
    %s57 = sadd.s32 %s56, 1
    %p60 = scmp.eq.s32.totalorder %s8, 3
    %p61 = scmp.ne.s32.totalorder %s56, %s58
    %p62 = scmp.eq.s32.totalorder %s8, 0
    %p63 = por %p61, %p62
    %p64 = scmp.ne.s32.totalorder %s56, %s58
    %p65 = scmp.eq.s32.totalorder %s13, 3
    %p66 = por %p64, %p65
    %p67 = scmp.ne.s32.totalorder %s58, %s59
    %p68 = scmp.eq.s32.totalorder %s13, 0
    %p69 = por %p67, %p68
    %p70 = scmp.ne.s32.totalorder %s58, %s59
    %p71 = scmp.eq.s32.totalorder %s14, 3
    %p72 = por %p70, %p71
    %p74 = scmp.ne.s32.totalorder %s59, %s73
    %p75 = scmp.eq.s32.totalorder %s14, 0
    %p76 = por %p74, %p75
    %s77 = ssub.s32 %s15, %s27
    %s78 = ssub.s32 %s16, %s23
    %s79 = sor.u32 %s77, %s78
    %p80 = scmp.eq.s32.totalorder %s79, 0
    %s82 = sadd.s32 %s81, 1
    %s83 = scalar_select %p80, %s81, %s82
    %p86 = pneg %p80
    %p87 = scmp.eq.s32.totalorder %s8, 3
    %p88 = por %p86, %p87
    %p89 = scmp.ne.s32.totalorder %s81, %s84
    %p90 = scmp.eq.s32.totalorder %s8, 0
    %p91 = por %p89, %p90
    %p92 = scmp.ne.s32.totalorder %s81, %s84
    %p93 = scmp.eq.s32.totalorder %s13, 3
    %p94 = por %p92, %p93
    %p95 = scmp.ne.s32.totalorder %s84, %s85
    %p96 = scmp.eq.s32.totalorder %s13, 0
    %p97 = por %p95, %p96
    %p98 = scmp.ne.s32.totalorder %s84, %s85
    %p99 = scmp.eq.s32.totalorder %s14, 3
    %p100 = por %p98, %p99
    %p102 = scmp.ne.s32.totalorder %s85, %s101
    %p103 = scmp.eq.s32.totalorder %s14, 0
    %p104 = por %p102, %p103
    %p105 = scmp.le.s32.totalorder 1, %s8
    %p106 = scmp.lt.s32.totalorder %s8, 5
    %p107 = pnand %p105, %p106
    %p108 = pneg %p107
    // Predicated region
    $region9: #{tpu_custom_call.1} parent=5 // pred_check
      _
    $region10: #{tpu_custom_call.1} parent=5 // pred_check_branch
      %110 = sbr.rel (%p107) target = $region12
    $region11: #{tpu_custom_call.1} parent=5 // pred_region
      %s111 = ssub.s32 %s8, 1
      // Predicated region
      $region13: #{tpu_custom_call.1} parent=11 // pred_check
        %p112 = pneg %p69
      $region14: #{tpu_custom_call.1} parent=11 // pred_check_branch
        %114 = sbr.rel (%p112) target = $region16
      $region15: #{tpu_custom_call.1} parent=11 // pred_region
        _
      $region16: #{tpu_custom_call.1} parent=11 // pred_fallthru
        _
    $region12: #{tpu_custom_call.1} parent=5 // pred_fallthru
      _
    %p115 = scmp.lt.s32.totalorder %s8, 4
    // Predicated region
    $region17: #{tpu_custom_call.1} parent=5 // pred_check
      %p116 = pneg %p115
    $region18: #{tpu_custom_call.1} parent=5 // pred_check_branch
      %118 = sbr.rel (%p116) target = $region20
    $region19: #{tpu_custom_call.1} parent=5 // pred_region
      // Predicated region
      $region21: #{tpu_custom_call.1} parent=19 // pred_check
        %p119 = pneg %p42
      $region22: #{tpu_custom_call.1} parent=19 // pred_check_branch
        %121 = sbr.rel (%p119) target = $region24
      $region23: #{tpu_custom_call.1} parent=19 // pred_region
        %s122 = smul.u32 8, %s16
        %p123 = scmp.lt.s32.totalorder %s15, 1
        %s124 = scalar_select %p123, %s15, 1
        %p125 = scmp.lt.s32.totalorder %s122, 15
        %s126 = scalar_select %p125, %s122, 15
        %s127 = smul.addr %s124, 16
        %s128 = sadd.s32 %s126, %s127
        %s129 = smul.addr %s128, 8
        %s130 = scalar_lea.vmem %s0, %s129
        %s131 = smul.u32 8, %s16
      $region24: #{tpu_custom_call.1} parent=19 // pred_fallthru
        _
    $region20: #{tpu_custom_call.1} parent=5 // pred_fallthru
      _
    %p132 = scmp.le.s32.totalorder 1, %s8
    %p133 = scmp.lt.s32.totalorder %s8, 5
    %p134 = pnand %p132, %p133
    %p135 = pneg %p134
    // Predicated region
    $region25: #{tpu_custom_call.1} parent=5 // pred_check
      _
    $region26: #{tpu_custom_call.1} parent=5 // pred_check_branch
      %137 = sbr.rel (%p134) target = $region28
    $region27: #{tpu_custom_call.1} parent=5 // pred_region
      %s138 = ssub.s32 %s8, 1
      %s139 = smul.u32 8, %s18
      %p140 = scmp.lt.s32.totalorder %s17, 1
      %s141 = scalar_select %p140, %s17, 1
      %p142 = scmp.lt.s32.totalorder %s139, 15
      %s143 = scalar_select %p142, %s139, 15
      %s144 = smul.addr %s141, 16
      %s145 = sadd.s32 %s143, %s144
      %s146 = smul.addr %s145, 8
      %s147 = scalar_lea.vmem %s0, %s146
      %p148 = pneg %p48
      %p149 = pneg %p45
      %p150 = pneg %p69
      %p151 = pneg %p66
      %p152 = pneg %p97
      %p153 = pneg %p94
      %s154 = smul.u32 16, %s18
      %p155 = scmp.lt.s32.totalorder %s17, 1
      %s156 = scalar_select %p155, %s17, 1
      %p157 = scmp.lt.s32.totalorder %s154, 31
      %s158 = scalar_select %p157, %s154, 31
      %s159 = smul.addr %s156, 32
      %s160 = sadd.s32 %s158, %s159
      %s161 = smul.addr %s160, 8
      %s162 = scalar_lea.vmem %s2, %s161
      %s163 = smul.u32 8, %s18
      %p164 = scmp.lt.s32.totalorder %s17, 1
      %s165 = scalar_select %p164, %s17, 1
      %p166 = scmp.lt.s32.totalorder %s163, 15
      %s167 = scalar_select %p166, %s163, 15
      %s168 = smul.addr %s165, 16
      %s169 = sadd.s32 %s167, %s168
      %s170 = smul.addr %s169, 8
      %s171 = scalar_lea.vmem %s0, %s170
      %s172 = smul.u32 8, %s18
      %s173 = smul.u32 16, %s18
      %p174 = scmp.lt.s32.totalorder %s17, 1
      %s175 = scalar_select %p174, %s17, 1
      %p176 = scmp.lt.s32.totalorder %s173, 31
      %s177 = scalar_select %p176, %s173, 31
      %s178 = smul.addr %s175, 32
      %s179 = sadd.s32 %s177, %s178
      %s180 = smul.addr %s179, 8
      %s181 = scalar_lea.vmem %s2, %s180
      %s182 = smul.u32 16, %s18
      %v183 = vld [vmem:[%s171] sm:$0xff]
      %v184 = vld [vmem:[%s171 + $0x8] sm:$0xff]
      %v185 = vld [vmem:[%s171 + $0x10] sm:$0xff]
      %v186 = vld [vmem:[%s171 + $0x18] sm:$0xff]
      %v187 = vld [vmem:[%s171 + $0x20] sm:$0xff]
      %v188 = vld [vmem:[%s171 + $0x28] sm:$0xff]
      %v189 = vld [vmem:[%s171 + $0x30] sm:$0xff]
      %v190 = vld [vmem:[%s171 + $0x38] sm:$0xff]
      %v191 = vld [vmem:[%s1] sm:$0xff]
      %v192 = vld [vmem:[%s1 + $0x8] sm:$0xff]
      %v193 = vld [vmem:[%s1 + $0x10] sm:$0xff]
      %v194 = vld [vmem:[%s1 + $0x18] sm:$0xff]
      %v195 = vld [vmem:[%s1 + $0x20] sm:$0xff]
      %v196 = vld [vmem:[%s1 + $0x28] sm:$0xff]
      %v197 = vld [vmem:[%s1 + $0x30] sm:$0xff]
      %v198 = vld [vmem:[%s1 + $0x38] sm:$0xff]
      %vm199 = vcmask 261120
      %v201 = vsel %vm199, %v183, 0
      %v204 = vsel %vm199, %v184, 0
      %v207 = vsel %vm199, %v185, 0
      %v210 = vsel %vm199, %v186, 0
      %v213 = vsel %vm199, %v187, 0
      %v216 = vsel %vm199, %v188, 0
      %v219 = vsel %vm199, %v189, 0
      %v222 = vsel %vm199, %v190, 0
      %224 = vmatprep.subr.mxu0 0.0
      %225 = vmatpush1.msra.mxu0 0.0
      %226 = vmatprep.subr.mxu0 0.0
      %227 = vmatpush1.msra.mxu0 0.0
      %228 = vmatprep.subr.mxu0 0.0
      %229 = vmatpush1.msra.mxu0 0.0
      %230 = vmatprep.subr.mxu0 0.0
      %231 = vmatpush1.msra.mxu0 0.0
      %232 = vmatprep.subr.mxu0 0.0
      %233 = vmatpush1.msra.mxu0 0.0
      %234 = vmatprep.subr.mxu0 0.0
      %235 = vmatpush1.msra.mxu0 0.0
      %236 = vmatprep.subr.mxu0 0.0
      %237 = vmatpush1.msra.mxu0 0.0
      %238 = vmatprep.subr.mxu0 0.0
      %239 = vmatpush1.msra.mxu0 0.0
      %240 = vmatprep.subr.mxu0 0.0
      %241 = vmatpush1.msra.mxu0 0.0
      %242 = vmatprep.subr.mxu0 0.0
      %243 = vmatpush1.msra.mxu0 0.0
      %244 = vmatprep.subr.mxu0 0.0
      %245 = vmatpush1.msra.mxu0 0.0
      %246 = vmatprep.subr.mxu0 0.0
      %247 = vmatpush1.msra.mxu0 0.0
      %248 = vmatprep.subr.mxu0 %v198
      %249 = vmatpush1.msra.mxu0 %v197
      %250 = vmatprep.subr.mxu0 %v196
      %251 = vmatpush1.msra.mxu0 %v195
      %252 = vmatprep.subr.mxu0 %v194
      %253 = vmatpush1.msra.mxu0 %v193
      %254 = vmatprep.subr.mxu0 %v192
      %255 = vmatpush1.msra.mxu0 %v191
      %256 = vmatprep.subr.mxu0 0.0
      %257 = vmatpush2.msra.mxu0 0.0
      %258 = vmatprep.subr.mxu0 0.0
      %259 = vmatpush2.msra.mxu0 0.0
      %260 = vmatprep.subr.mxu0 0.0
      %261 = vmatpush2.msra.mxu0 0.0
      %262 = vmatprep.subr.mxu0 0.0
      %263 = vmatpush2.msra.mxu0 0.0
      %264 = vmatprep.subr.mxu0 0.0
      %265 = vmatpush2.msra.mxu0 0.0
      %266 = vmatprep.subr.mxu0 0.0
      %267 = vmatpush2.msra.mxu0 0.0
      %268 = vmatprep.subr.mxu0 0.0
      %269 = vmatpush2.msra.mxu0 0.0
      %270 = vmatprep.subr.mxu0 0.0
      %271 = vmatpush2.msra.mxu0 0.0
      %272 = vmatprep.subr.mxu0 0.0
      %273 = vmatpush2.msra.mxu0 0.0
      %274 = vmatprep.subr.mxu0 0.0
      %275 = vmatpush2.msra.mxu0 0.0
      %276 = vmatprep.subr.mxu0 0.0
      %277 = vmatpush2.msra.mxu0 0.0
      %278 = vmatprep.subr.mxu0 0.0
      %279 = vmatpush2.msra.mxu0 0.0
      %280 = vmatprep.subr.mxu0 0.0
      %281 = vmatpush2.msra.mxu0 0.0
      %282 = vmatprep.subr.mxu0 0.0
      %283 = vmatpush2.msra.mxu0 0.0
      %284 = vmatprep.subr.mxu0 0.0
      %285 = vmatpush2.msra.mxu0 0.0
      %286 = vmatprep.subr.mxu0 0.0
      %287 = vmatpush2.msra.mxu0 0.0
      %288 = vmatprep.mubr.f32.mxu0 0.0
      %289 = vmatmul.mubr.f32.gmra.mxu0 %v201
      %v290 = vpop.f32.mrf.mxu0
      %v291 = vadd.f32 0.0, %v290
      %v292 = vpop.f32.mrf.mxu0
      %v293 = vadd.f32 0.0, %v292
      %294 = vmatprep.mubr.f32.mxu0 0.0
      %295 = vmatmul.mubr.f32.gmra.mxu0 %v204
      %v296 = vpop.f32.mrf.mxu0
      %v297 = vadd.f32 0.0, %v296
      %v298 = vpop.f32.mrf.mxu0
      %v299 = vadd.f32 0.0, %v298
      %300 = vmatprep.mubr.f32.mxu0 0.0
      %301 = vmatmul.mubr.f32.gmra.mxu0 %v207
      %v302 = vpop.f32.mrf.mxu0
      %v303 = vadd.f32 0.0, %v302
      %v304 = vpop.f32.mrf.mxu0
      %v305 = vadd.f32 0.0, %v304
      %306 = vmatprep.mubr.f32.mxu0 0.0
      %307 = vmatmul.mubr.f32.gmra.mxu0 %v210
      %v308 = vpop.f32.mrf.mxu0
      %v309 = vadd.f32 0.0, %v308
      %v310 = vpop.f32.mrf.mxu0
      %v311 = vadd.f32 0.0, %v310
      %312 = vmatprep.mubr.f32.mxu0 0.0
      %313 = vmatmul.mubr.f32.gmra.mxu0 %v213
      %v314 = vpop.f32.mrf.mxu0
      %v315 = vadd.f32 0.0, %v314
      %v316 = vpop.f32.mrf.mxu0
      %v317 = vadd.f32 0.0, %v316
      %318 = vmatprep.mubr.f32.mxu0 0.0
      %319 = vmatmul.mubr.f32.gmra.mxu0 %v216
      %v320 = vpop.f32.mrf.mxu0
      %v321 = vadd.f32 0.0, %v320
      %v322 = vpop.f32.mrf.mxu0
      %v323 = vadd.f32 0.0, %v322
      %324 = vmatprep.mubr.f32.mxu0 0.0
      %325 = vmatmul.mubr.f32.gmra.mxu0 %v219
      %v326 = vpop.f32.mrf.mxu0
      %v327 = vadd.f32 0.0, %v326
      %v328 = vpop.f32.mrf.mxu0
      %v329 = vadd.f32 0.0, %v328
      %330 = vmatprep.mubr.f32.mxu0 0.0
      %331 = vmatmul.mubr.f32.gmra.mxu0 %v222
      %v332 = vpop.f32.mrf.mxu0
      %v333 = vadd.f32 0.0, %v332
      %v334 = vpop.f32.mrf.mxu0
      %v335 = vadd.f32 0.0, %v334
      %336 = vdwg.mxu0
      %vm337 = vcmask 64512
      %338 = vst.msk [vmem:[%s181] sm:$0xff] %vm337, %v291
      %339 = vst.msk [vmem:[%s181 + $0x8] sm:$0xff] %vm337, %v293
      %340 = vst.msk [vmem:[%s181 + $0x10] sm:$0xff] %vm337, %v297
      %341 = vst.msk [vmem:[%s181 + $0x18] sm:$0xff] %vm337, %v299
      %342 = vst.msk [vmem:[%s181 + $0x20] sm:$0xff] %vm337, %v303
      %343 = vst.msk [vmem:[%s181 + $0x28] sm:$0xff] %vm337, %v305
      %344 = vst.msk [vmem:[%s181 + $0x30] sm:$0xff] %vm337, %v309
      %345 = vst.msk [vmem:[%s181 + $0x38] sm:$0xff] %vm337, %v311
      %346 = vst.msk [vmem:[%s181 + $0x40] sm:$0xff] %vm337, %v315
      %347 = vst.msk [vmem:[%s181 + $0x48] sm:$0xff] %vm337, %v317
      %348 = vst.msk [vmem:[%s181 + $0x50] sm:$0xff] %vm337, %v321
      %349 = vst.msk [vmem:[%s181 + $0x58] sm:$0xff] %vm337, %v323
      %350 = vst.msk [vmem:[%s181 + $0x60] sm:$0xff] %vm337, %v327
      %351 = vst.msk [vmem:[%s181 + $0x68] sm:$0xff] %vm337, %v329
      %352 = vst.msk [vmem:[%s181 + $0x70] sm:$0xff] %vm337, %v333
      %353 = vst.msk [vmem:[%s181 + $0x78] sm:$0xff] %vm337, %v335
      %s354 = smul.u32 16, %s18
      %p355 = scmp.lt.s32.totalorder %s17, 1
      %s356 = scalar_select %p355, %s17, 1
      %p357 = scmp.lt.s32.totalorder %s354, 31
      %s358 = scalar_select %p357, %s354, 31
      %s359 = smul.addr %s356, 32
      %s360 = sadd.s32 %s358, %s359
      %s361 = smul.addr %s360, 8
      %s362 = scalar_lea.vmem %s2, %s361
      // Predicated region
      $region29: #{tpu_custom_call.1} parent=27 // pred_check
        %p363 = pneg %p94
      $region30: #{tpu_custom_call.1} parent=27 // pred_check_branch
        %365 = sbr.rel (%p363) target = $region32
      $region31: #{tpu_custom_call.1} parent=27 // pred_region
        %s366 = smul.u32 16, %s18
      $region32: #{tpu_custom_call.1} parent=27 // pred_fallthru
        _
    $region28: #{tpu_custom_call.1} parent=5 // pred_fallthru
      _
    %p367 = scmp.le.s32.totalorder 2, %s8
    // Predicated region
    $region33: #{tpu_custom_call.1} parent=5 // pred_check
      %p368 = pneg %p367
    $region34: #{tpu_custom_call.1} parent=5 // pred_check_branch
      %370 = sbr.rel (%p368) target = $region36
    $region35: #{tpu_custom_call.1} parent=5 // pred_region
      %s371 = ssub.s32 %s8, 2
      // Predicated region
      $region37: #{tpu_custom_call.1} parent=35 // pred_check
        %p372 = pneg %p100
      $region38: #{tpu_custom_call.1} parent=35 // pred_check_branch
        %374 = sbr.rel (%p372) target = $region40
      $region39: #{tpu_custom_call.1} parent=35 // pred_region
        %s375 = smul.u32 16, %s20
        %p376 = scmp.lt.s32.totalorder %s19, 1
        %s377 = scalar_select %p376, %s19, 1
        %p378 = scmp.lt.s32.totalorder %s375, 31
        %s379 = scalar_select %p378, %s375, 31
        %s380 = smul.addr %s377, 32
        %s381 = sadd.s32 %s379, %s380
        %s382 = smul.addr %s381, 8
        %s383 = scalar_lea.vmem %s2, %s382
      $region40: #{tpu_custom_call.1} parent=35 // pred_fallthru
        _
    $region36: #{tpu_custom_call.1} parent=5 // pred_fallthru
      _
  $region6: #{tpu_custom_call.1} parent=0 // loop_footer
    %s12 = sadd.s32 1, %s8
  $region7: #{tpu_custom_call.1} parent=0 // loop_footer_branch
    %7 = sbr.rel target = $region3
  $region8: #{tpu_custom_call.1} parent=0 // loop_exit
    _

</llo_original>
